<compile_context>
chip_gen: v5e
topology: v5e:2x2
jax: 0.10.0
libtpu: 0.0.40
codegen_flags: <defaults>
</compile_context>

<pallas_src>
import functools

import jax
import jax.numpy as jnp
from jax.experimental import pallas as pl
from jax.experimental.pallas import tpu as pltpu

# ----------------------- config (small synthetic sizes) -----------------------
FIELD_HIDDEN = 32     # config.field_hidden_size
HIDDEN = 64           # config.hidden_size
VOCAB = 128           # config.vocab_size
LN_EPS = 1e-12        # config.layer_norm_eps (BERT default)

BATCH = 2
SEQ = 8
TM_DEFAULT = 512      # row tile (rows per grid step); clamped for tiny inputs


# --------------------------------- kernel -------------------------------------
def _lm_head_kernel(x_ref, w1_ref, b1_ref, ln_g_ref, ln_b_ref, w2_ref, b2_ref,
                    o_ref):
    # dense: (TM, FH)bf16 @ (FH, H)bf16 -> f32 accumulate, + (1, H)
    h = jnp.dot(x_ref[...], w1_ref[...], preferred_element_type=jnp.float32)
    h = h + b1_ref[...]

    # gelu (exact, erf-based — matches HF ACT2FN["gelu"]); f32 math
    h = 0.5 * h * (1.0 + jax.lax.erf(h * 0.7071067811865476))

    # LayerNorm over the last axis (f32 statistics)
    mean = jnp.mean(h, axis=-1, keepdims=True)
    centered = h - mean
    var = jnp.mean(centered * centered, axis=-1, keepdims=True)
    h = centered * jax.lax.rsqrt(var + LN_EPS)
    h = h * ln_g_ref[...] + ln_b_ref[...]

    # decoder: (TM, H)bf16 @ (H, V)bf16 -> f32 accumulate, + (1, V)
    out = jnp.dot(h.astype(w2_ref.dtype), w2_ref[...],
                  preferred_element_type=jnp.float32)
    o_ref[...] = (out + b2_ref[...]).astype(o_ref.dtype)


# --------------------------------- wrapper ------------------------------------
@functools.partial(jax.jit, static_argnames=("tm",))
def tabformer_lm_head(x, w1, b1, ln_g, ln_b, w2, b2, *, tm=TM_DEFAULT):
    """x: (M, FIELD_HIDDEN) float32 -> logits (M, VOCAB) float32."""
    M = x.shape[0]

    # Clamp the tile for tiny inputs, then pad M up to a multiple of tm.
    tm = min(tm, max(8, ((M + 7) // 8) * 8))
    m_pad = pl.cdiv(M, tm) * tm
    if m_pad != M:
        x = jnp.pad(x, ((0, m_pad - M), (0, 0)))
    grid = (m_pad // tm,)

    # bf16 matmul operands (halves HBM bytes, doubles MXU rate on v6e/v7x);
    # biases / LN params stay f32.
    x_b = x.astype(jnp.bfloat16)
    w1_b = w1.astype(jnp.bfloat16)
    w2_b = w2.astype(jnp.bfloat16)

    full = lambda shape: pl.BlockSpec(shape, lambda i: (0, 0))

    bytes_accessed = (
        m_pad * FIELD_HIDDEN * 2          # x (bf16)
        + FIELD_HIDDEN * HIDDEN * 2       # W1 (bf16)
        + HIDDEN * VOCAB * 2              # W2 (bf16)
        + (2 * HIDDEN + VOCAB) * 4        # b1, ln_g, ln_b, b2 (f32)
        + m_pad * VOCAB * 4               # logits (f32)
    )
    cost = pl.CostEstimate(
        flops=2 * m_pad * (FIELD_HIDDEN * HIDDEN + HIDDEN * VOCAB),
        transcendentals=m_pad * HIDDEN,   # erf + rsqrt per hidden element (approx)
        bytes_accessed=bytes_accessed,
    )

    out = pl.pallas_call(
        _lm_head_kernel,
        out_shape=jax.ShapeDtypeStruct((m_pad, VOCAB), jnp.float32),
        grid_spec=pltpu.PrefetchScalarGridSpec(
            num_scalar_prefetch=0,
            grid=grid,
            in_specs=[
                pl.BlockSpec((tm, FIELD_HIDDEN), lambda i: (i, 0)),  # x tile
                full((FIELD_HIDDEN, HIDDEN)),                        # W1
                full((1, HIDDEN)),                                   # b1
                full((1, HIDDEN)),                                   # LN gamma
                full((1, HIDDEN)),                                   # LN beta
                full((HIDDEN, VOCAB)),                               # W2
                full((1, VOCAB)),                                    # decoder bias
            ],
            out_specs=pl.BlockSpec((tm, VOCAB), lambda i: (i, 0)),
        ),
        compiler_params=pltpu.CompilerParams(
            dimension_semantics=("parallel",)),
        cost_estimate=cost,
    )(x_b, w1_b, b1, ln_g, ln_b, w2_b, b2)

    return out[:M]


# ----------------------------------- main --------------------------------------
if __name__ == "__main__":
    key = jax.random.PRNGKey(0)
    k_x, k_w1, k_b1, k_w2 = jax.random.split(key, 4)

    # deterministic synthetic parameters (torch Linear weights are (out, in);
    # we store them transposed as (in, out) for the kernel).
    x = jax.random.normal(k_x, (BATCH, SEQ, FIELD_HIDDEN), dtype=jnp.float32)
    w1 = jax.random.normal(k_w1, (FIELD_HIDDEN, HIDDEN), dtype=jnp.float32) * 0.02
    b1 = jax.random.normal(k_b1, (1, HIDDEN), dtype=jnp.float32) * 0.02
    ln_g = jnp.ones((1, HIDDEN), dtype=jnp.float32)
    ln_b = jnp.zeros((1, HIDDEN), dtype=jnp.float32)
    w2 = jax.random.normal(k_w2, (HIDDEN, VOCAB), dtype=jnp.float32) * 0.02
    b2 = jnp.zeros((1, VOCAB), dtype=jnp.float32)   # self.bias = zeros(vocab)

    x2d = x.reshape(BATCH * SEQ, FIELD_HIDDEN)
    logits = tabformer_lm_head(x2d, w1, b1, ln_g, ln_b, w2, b2)
    logits = logits.reshape(BATCH, SEQ, VOCAB)
    jax.block_until_ready(logits)

    # reference check in plain JAX, applying the same bf16 matmul-operand casts
    # (accumulation / gelu / LayerNorm in f32, identical to the kernel).
    h_ref = jnp.dot(x2d.astype(jnp.bfloat16), w1.astype(jnp.bfloat16),
                    preferred_element_type=jnp.float32) + b1
    h_ref = 0.5 * h_ref * (1.0 + jax.lax.erf(h_ref / jnp.sqrt(2.0)))
    mu = h_ref.mean(-1, keepdims=True)
    var = ((h_ref - mu) ** 2).mean(-1, keepdims=True)
    h_ref = (h_ref - mu) * jax.lax.rsqrt(var + LN_EPS) * ln_g + ln_b
    ref = (jnp.dot(h_ref.astype(jnp.bfloat16), w2.astype(jnp.bfloat16),
                   preferred_element_type=jnp.float32) + b2)
    ref = ref.reshape(BATCH, SEQ, VOCAB)
    assert jnp.allclose(logits, ref, atol=1e-2, rtol=1e-2), (
        float(jnp.max(jnp.abs(logits - ref))))

    print("KERNEL_OK")
</pallas_src>

<mosaic_0001>
module attributes {stable_mosaic.version = 11 : i64} {
  func.func @_lm_head_kernel(%arg0: i32, %arg1: memref<16x32xbf16, #tpu.memory_space<vmem>>, %arg2: memref<32x64xbf16, #tpu.memory_space<vmem>>, %arg3: memref<1x64xf32, #tpu.memory_space<vmem>>, %arg4: memref<1x64xf32, #tpu.memory_space<vmem>>, %arg5: memref<1x64xf32, #tpu.memory_space<vmem>>, %arg6: memref<64x128xbf16, #tpu.memory_space<vmem>>, %arg7: memref<1x128xf32, #tpu.memory_space<vmem>>, %arg8: memref<16x128xf32, #tpu.memory_space<vmem>>) attributes {dimension_semantics = [#tpu.dimension_semantics<parallel>], iteration_bounds = array<i64: 1>, scalar_prefetch = 0 : i64, scratch_operands = 0 : i64, tpu.core_type = #tpu.core_type<tc>, window_params = [{transform_indices = @transform_0, window_bounds = array<i64: 16, 32>}, {pipeline_mode = #tpu.pipeline_mode<synchronous>, transform_indices = @transform_1, window_bounds = array<i64: 32, 64>}, {pipeline_mode = #tpu.pipeline_mode<synchronous>, transform_indices = @transform_2, window_bounds = array<i64: 1, 64>}, {pipeline_mode = #tpu.pipeline_mode<synchronous>, transform_indices = @transform_3, window_bounds = array<i64: 1, 64>}, {pipeline_mode = #tpu.pipeline_mode<synchronous>, transform_indices = @transform_4, window_bounds = array<i64: 1, 64>}, {pipeline_mode = #tpu.pipeline_mode<synchronous>, transform_indices = @transform_5, window_bounds = array<i64: 64, 128>}, {pipeline_mode = #tpu.pipeline_mode<synchronous>, transform_indices = @transform_6, window_bounds = array<i64: 1, 128>}, {transform_indices = @transform_7, window_bounds = array<i64: 16, 128>}]} {
    %c0 = arith.constant 0 : index
    %c0_0 = arith.constant 0 : index
    %0 = vector.load %arg1[%c0, %c0_0] : memref<16x32xbf16, #tpu.memory_space<vmem>>, vector<16x32xbf16>
    %c0_1 = arith.constant 0 : index
    %c0_2 = arith.constant 0 : index
    %1 = vector.load %arg2[%c0_1, %c0_2] : memref<32x64xbf16, #tpu.memory_space<vmem>>, vector<32x64xbf16>
    %cst = arith.constant dense<0.000000e+00> : vector<16x64xf32>
    %2 = tpu.matmul %0, %1, %cst {dimension_numbers = #tpu.dot_dimension_numbers<[1], [0], [0], [1], [0, 0, 1, 1], [], []>} : vector<16x32xbf16>, vector<32x64xbf16>, vector<16x64xf32> -> vector<16x64xf32>
    %c0_3 = arith.constant 0 : index
    %c0_4 = arith.constant 0 : index
    %3 = vector.load %arg3[%c0_3, %c0_4] : memref<1x64xf32, #tpu.memory_space<vmem>>, vector<1x64xf32>
    %4 = vector.broadcast %3 : vector<1x64xf32> to vector<16x64xf32>
    %5 = arith.addf %2, %4 : vector<16x64xf32>
    %cst_5 = arith.constant 5.000000e-01 : f32
    %6 = vector.broadcast %cst_5 : f32 to vector<16x64xf32>
    %7 = arith.mulf %6, %5 : vector<16x64xf32>
    %cst_6 = arith.constant 0.707106769 : f32
    %8 = vector.broadcast %cst_6 : f32 to vector<16x64xf32>
    %9 = arith.mulf %5, %8 : vector<16x64xf32>
    %10 = math.erf %9 : vector<16x64xf32>
    %cst_7 = arith.constant 1.000000e+00 : f32
    %11 = vector.broadcast %cst_7 : f32 to vector<16x64xf32>
    %12 = arith.addf %11, %10 : vector<16x64xf32>
    %13 = arith.mulf %7, %12 : vector<16x64xf32>
    %cst_8 = arith.constant dense<0.000000e+00> : vector<16xf32>
    %14 = vector.multi_reduction <add>, %13, %cst_8 [1] : vector<16x64xf32> to vector<16xf32>
    %15 = vector.shape_cast %14 : vector<16xf32> to vector<16x1xf32>
    %cst_9 = arith.constant 6.400000e+01 : f32
    %16 = vector.broadcast %cst_9 : f32 to vector<16x1xf32>
    %17 = arith.divf %15, %16 : vector<16x1xf32>
    %18 = vector.broadcast %17 : vector<16x1xf32> to vector<16x64xf32>
    %19 = arith.subf %13, %18 : vector<16x64xf32>
    %20 = arith.mulf %19, %19 : vector<16x64xf32>
    %cst_10 = arith.constant dense<0.000000e+00> : vector<16xf32>
    %21 = vector.multi_reduction <add>, %20, %cst_10 [1] : vector<16x64xf32> to vector<16xf32>
    %22 = vector.shape_cast %21 : vector<16xf32> to vector<16x1xf32>
    %cst_11 = arith.constant 6.400000e+01 : f32
    %23 = vector.broadcast %cst_11 : f32 to vector<16x1xf32>
    %24 = arith.divf %22, %23 : vector<16x1xf32>
    %cst_12 = arith.constant 9.99999996E-13 : f32
    %25 = vector.broadcast %cst_12 : f32 to vector<16x1xf32>
    %26 = arith.addf %24, %25 : vector<16x1xf32>
    %27 = math.rsqrt %26 : vector<16x1xf32>
    %28 = vector.broadcast %27 : vector<16x1xf32> to vector<16x64xf32>
    %29 = arith.mulf %19, %28 : vector<16x64xf32>
    %c0_13 = arith.constant 0 : index
    %c0_14 = arith.constant 0 : index
    %30 = vector.load %arg4[%c0_13, %c0_14] : memref<1x64xf32, #tpu.memory_space<vmem>>, vector<1x64xf32>
    %31 = vector.broadcast %30 : vector<1x64xf32> to vector<16x64xf32>
    %32 = arith.mulf %29, %31 : vector<16x64xf32>
    %c0_15 = arith.constant 0 : index
    %c0_16 = arith.constant 0 : index
    %33 = vector.load %arg5[%c0_15, %c0_16] : memref<1x64xf32, #tpu.memory_space<vmem>>, vector<1x64xf32>
    %34 = vector.broadcast %33 : vector<1x64xf32> to vector<16x64xf32>
    %35 = arith.addf %32, %34 : vector<16x64xf32>
    %36 = arith.truncf %35 : vector<16x64xf32> to vector<16x64xbf16>
    %c0_17 = arith.constant 0 : index
    %c0_18 = arith.constant 0 : index
    %37 = vector.load %arg6[%c0_17, %c0_18] : memref<64x128xbf16, #tpu.memory_space<vmem>>, vector<64x128xbf16>
    %cst_19 = arith.constant dense<0.000000e+00> : vector<16x128xf32>
    %38 = tpu.matmul %36, %37, %cst_19 {dimension_numbers = #tpu.dot_dimension_numbers<[1], [0], [0], [1], [0, 0, 1, 1], [], []>} : vector<16x64xbf16>, vector<64x128xbf16>, vector<16x128xf32> -> vector<16x128xf32>
    %c0_20 = arith.constant 0 : index
    %c0_21 = arith.constant 0 : index
    %39 = vector.load %arg7[%c0_20, %c0_21] : memref<1x128xf32, #tpu.memory_space<vmem>>, vector<1x128xf32>
    %40 = vector.broadcast %39 : vector<1x128xf32> to vector<16x128xf32>
    %41 = arith.addf %38, %40 : vector<16x128xf32>
    %c0_22 = arith.constant 0 : index
    %c0_23 = arith.constant 0 : index
    %42 = vector.load %arg8[%c0_22, %c0_23] : memref<16x128xf32, #tpu.memory_space<vmem>>, vector<16x128xf32>
    tpu.vector_store %arg8[%c0_22, %c0_23], %41 {strides = array<i32>} : memref<16x128xf32, #tpu.memory_space<vmem>>, vector<16x128xf32>,
    return
  }
  func.func @transform_0(%arg0: i32) -> (i32, i32) {
    %c0_i32 = arith.constant 0 : i32
    %c0_i32_0 = arith.constant 0 : i32
    return %arg0, %c0_i32 : i32, i32
  }
  func.func @transform_1(%arg0: i32) -> (i32, i32) {
    %c0_i32 = arith.constant 0 : i32
    %c0_i32_0 = arith.constant 0 : i32
    %c0_i32_1 = arith.constant 0 : i32
    return %c0_i32, %c0_i32_0 : i32, i32
  }
  func.func @transform_2(%arg0: i32) -> (i32, i32) {
    %c0_i32 = arith.constant 0 : i32
    %c0_i32_0 = arith.constant 0 : i32
    %c0_i32_1 = arith.constant 0 : i32
    return %c0_i32, %c0_i32_0 : i32, i32
  }
  func.func @transform_3(%arg0: i32) -> (i32, i32) {
    %c0_i32 = arith.constant 0 : i32
    %c0_i32_0 = arith.constant 0 : i32
    %c0_i32_1 = arith.constant 0 : i32
    return %c0_i32, %c0_i32_0 : i32, i32
  }
  func.func @transform_4(%arg0: i32) -> (i32, i32) {
    %c0_i32 = arith.constant 0 : i32
    %c0_i32_0 = arith.constant 0 : i32
    %c0_i32_1 = arith.constant 0 : i32
    return %c0_i32, %c0_i32_0 : i32, i32
  }
  func.func @transform_5(%arg0: i32) -> (i32, i32) {
    %c0_i32 = arith.constant 0 : i32
    %c0_i32_0 = arith.constant 0 : i32
    %c0_i32_1 = arith.constant 0 : i32
    return %c0_i32, %c0_i32_0 : i32, i32
  }
  func.func @transform_6(%arg0: i32) -> (i32, i32) {
    %c0_i32 = arith.constant 0 : i32
    %c0_i32_0 = arith.constant 0 : i32
    %c0_i32_1 = arith.constant 0 : i32
    return %c0_i32, %c0_i32_0 : i32, i32
  }
  func.func @transform_7(%arg0: i32) -> (i32, i32) {
    %c0_i32 = arith.constant 0 : i32
    %c0_i32_0 = arith.constant 0 : i32
    return %arg0, %c0_i32 : i32, i32
  }
}

</mosaic_0001>

<llo_original>
// kernel: tabformer_lm_head.1
$region0: #{tabformer_lm_head.1}
  #allocation0 [shape = 'u32[]', space=smem, size = 0x4, offset = 0x4, fixed_abs, tag = 'smem constant byte address 0x4 - core index']
  #allocation1 [shape = 'u32[72,128]{1,0:T(1,128)}', space=vmem, size = 0x9000, scoped, tag = 'internal scratch']
  %s0 = inlined_call_operand.vmem [shape: bf16[16,32], index: 0, kind: input, shape index: {}]
  %s1 = inlined_call_operand.vmem [shape: bf16[32,64], index: 1, kind: input, shape index: {}]
  %s2 = inlined_call_operand.vmem [shape: f32[1,64], index: 2, kind: input, shape index: {}]
  %s3 = inlined_call_operand.vmem [shape: f32[1,64], index: 3, kind: input, shape index: {}]
  %s4 = inlined_call_operand.vmem [shape: f32[1,64], index: 4, kind: input, shape index: {}]
  %s5 = inlined_call_operand.vmem [shape: bf16[64,128], index: 5, kind: input, shape index: {}]
  %s6 = inlined_call_operand.vmem [shape: f32[1,128], index: 6, kind: input, shape index: {}]
  %s7 = inlined_call_operand.hbm [shape: f32[16,128], index: 7, kind: output, shape index: {}]
  %s8 = sld [smem:[#allocation0]]
  $region38: #{tabformer_lm_head.1} parent=0
    _
  %s10 = ssub.s32 1, %s8
  %s11 = scalar_select 0, %s10, %s8
  $region1: #{tabformer_lm_head.1} parent=0
    #allocation2 [shape = 'u8[8192]{0}', space=vmem, size = 0x2000, scoped, tag = 'output window, operand 0, single buffered']
    #allocation3 [shape = 's32[1]{0}', space=sflag, size = 0x4, scoped, tag = 'scoped memory for tabformer_lm_head.1']
    %12 = vsyncpa [#allocation3], 0
    // Predicated region
    $region2: #{tabformer_lm_head.1} parent=1 // pred_check
      _
    $region3: #{tabformer_lm_head.1} parent=1 // pred_check_branch
      %14 = sbr.rel (0) target = $region5
    $region4: #{tabformer_lm_head.1} parent=1 // pred_region
      _
    $region5: #{tabformer_lm_head.1} parent=1 // pred_fallthru
      _
    // Predicated region
    $region6: #{tabformer_lm_head.1} parent=1 // pred_check
      _
    $region7: #{tabformer_lm_head.1} parent=1 // pred_check_branch
      %16 = sbr.rel (0) target = $region9
    $region8: #{tabformer_lm_head.1} parent=1 // pred_region
      _
    $region9: #{tabformer_lm_head.1} parent=1 // pred_fallthru
      _
    // Predicated region
    $region10: #{tabformer_lm_head.1} parent=1 // pred_check
      _
    $region11: #{tabformer_lm_head.1} parent=1 // pred_check_branch
      %18 = sbr.rel (0) target = $region13
    $region12: #{tabformer_lm_head.1} parent=1 // pred_region
      _
    $region13: #{tabformer_lm_head.1} parent=1 // pred_fallthru
      _
    // Predicated region
    $region14: #{tabformer_lm_head.1} parent=1 // pred_check
      _
    $region15: #{tabformer_lm_head.1} parent=1 // pred_check_branch
      %20 = sbr.rel (0) target = $region17
    $region16: #{tabformer_lm_head.1} parent=1 // pred_region
      _
    $region17: #{tabformer_lm_head.1} parent=1 // pred_fallthru
      _
    // Predicated region
    $region18: #{tabformer_lm_head.1} parent=1 // pred_check
      _
    $region19: #{tabformer_lm_head.1} parent=1 // pred_check_branch
      %22 = sbr.rel (0) target = $region21
    $region20: #{tabformer_lm_head.1} parent=1 // pred_region
      _
    $region21: #{tabformer_lm_head.1} parent=1 // pred_fallthru
      _
    // Predicated region
    $region22: #{tabformer_lm_head.1} parent=1 // pred_check
      _
    $region23: #{tabformer_lm_head.1} parent=1 // pred_check_branch
      %24 = sbr.rel (0) target = $region25
    $region24: #{tabformer_lm_head.1} parent=1 // pred_region
      _
    $region25: #{tabformer_lm_head.1} parent=1 // pred_fallthru
      _
    // Predicated region
    $region26: #{tabformer_lm_head.1} parent=1 // pred_check
      _
    $region27: #{tabformer_lm_head.1} parent=1 // pred_check_branch
      %26 = sbr.rel (0) target = $region29
    $region28: #{tabformer_lm_head.1} parent=1 // pred_region
      _
    $region29: #{tabformer_lm_head.1} parent=1 // pred_fallthru
      _
    %v28 = vld [vmem:[%s0] sm:$0xf]
    %v29 = vld [vmem:[%s0 + $0x4] sm:$0xf]
    %v30 = vld [vmem:[%s1] sm:$0xf]
    %v31 = vld [vmem:[%s1 + $0x4] sm:$0xf]
    %v32 = vld [vmem:[%s1 + $0x8] sm:$0xf]
    %v33 = vld [vmem:[%s1 + $0xc] sm:$0xf]
    %v34 = vld [vmem:[%s2] sm:$0x1]
    %v36 = vperm.slane %v34, 0
    %v40 = vunpack.c.l.b16 %v28
    %v41 = vunpack.c.l.b16 %v29
    %v42 = vpack.c.b16 %v41, %v40
    %v47 = vunpack.c.l.b16 %v30
    %v48 = vunpack.c.l.b16 %v31
    %v49 = vunpack.c.l.b16 %v32
    %v50 = vunpack.c.l.b16 %v33
    %v51 = vpack.c.b16 %v48, %v47
    %v52 = vpack.c.b16 %v50, %v49
    %vm55 = vcmask 261120
    %v57 = vsel %vm55, %v42, 0
    %59 = vmatpush.bf16.msra.mxu0 0
    %60 = vmatpush.bf16.msra.mxu0 0
    %61 = vmatpush.bf16.msra.mxu0 0
    %62 = vmatpush.bf16.msra.mxu0 0
    %63 = vmatpush.bf16.msra.mxu0 0
    %64 = vmatpush.bf16.msra.mxu0 0
    %65 = vmatpush.bf16.msra.mxu0 %v52
    %66 = vmatpush.bf16.msra.mxu0 %v51
    %67 = vmatmul.bf16.gmra.mxu0 %v57
    %v68 = vpop.f32.mrf.mxu0
    %v69 = vadd.f32 %v36, %v68
    %v70 = vpop.f32.mrf.mxu0
    %v71 = vadd.f32 %v36, %v70
    %72 = vdwg.mxu0
    %v73 = vmul.f32 %v69, 0.5
    %v74 = vmul.f32 %v71, 0.5
    %v75 = vmul.f32 %v69, 0.70710677
    %v76 = vmul.f32 %v71, 0.70710677
    %v77 = vmul.f32 %v75, %v75
    %v78 = vmin.f32 16.0, %v77
    %v79 = vmul.f32 %v78, 2.1237322e-06
    %v80 = vadd.f32 %v79, 0.00028619796
    %v81 = vmul.f32 %v78, %v80
    %v82 = vadd.f32 %v81, 0.0036580483
    %v83 = vmul.f32 %v78, %v82
    %v84 = vadd.f32 %v83, 0.05243302
    %v85 = vmul.f32 %v78, %v84
    %v86 = vadd.f32 %v85, 0.18741608
    %v87 = vmul.f32 %v78, %v86
    %v88 = vadd.f32 %v87, 1.1283791
    %v89 = vmul.f32 %v75, %v88
    %v90 = vmul.f32 %v78, 3.8918573e-05
    %v91 = vadd.f32 %v90, 0.001143296
    %v92 = vmul.f32 %v78, %v91
    %v93 = vadd.f32 %v92, 0.014752088
    %v94 = vmul.f32 %v78, %v93
    %v95 = vadd.f32 %v94, 0.112945676
    %v96 = vmul.f32 %v78, %v95
    %v97 = vadd.f32 %v96, 0.4994258
    %v98 = vmul.f32 %v78, %v97
    %v99 = vadd.f32 %v98, 1.0
    %v100 = vrcp.pop %v99
    %v101 = vmul.f32 %v99, %v100
    %v102 = vsub.f32 1.0, %v101
    %v103 = vmul.f32 %v100, %v102
    %v104 = vadd.f32 %v100, %v103
    %vm105 = vweird.f32 %v99
    %vm106 = vweird.f32 %v100
    %vm107 = vmor %vm105, %vm106
    %v108 = vsel %vm107, %v100, %v104
    %v109 = vand.u32 2147483647, %v99
    %vm110 = vcmp.eq.f32.partialorder %v109, 8.507059e+37
    %v111 = vand.u32 %v99, 2147483648
    %v112 = vor.u32 1.1754944e-38, %v111
    %v113 = vsel %vm110, %v112, %v108
    %v114 = vmul.f32 %v89, %v113
    %v115 = vmin.f32 %v114, 1.0
    %v116 = vmax.f32 %v115, -1.0
    %v117 = vmul.f32 %v76, %v76
    %v118 = vmin.f32 16.0, %v117
    %v119 = vmul.f32 %v118, 2.1237322e-06
    %v120 = vadd.f32 %v119, 0.00028619796
    %v121 = vmul.f32 %v118, %v120
    %v122 = vadd.f32 %v121, 0.0036580483
    %v123 = vmul.f32 %v118, %v122
    %v124 = vadd.f32 %v123, 0.05243302
    %v125 = vmul.f32 %v118, %v124
    %v126 = vadd.f32 %v125, 0.18741608
    %v127 = vmul.f32 %v118, %v126
    %v128 = vadd.f32 %v127, 1.1283791
    %v129 = vmul.f32 %v76, %v128
    %v130 = vmul.f32 %v118, 3.8918573e-05
    %v131 = vadd.f32 %v130, 0.001143296
    %v132 = vmul.f32 %v118, %v131
    %v133 = vadd.f32 %v132, 0.014752088
    %v134 = vmul.f32 %v118, %v133
    %v135 = vadd.f32 %v134, 0.112945676
    %v136 = vmul.f32 %v118, %v135
    %v137 = vadd.f32 %v136, 0.4994258
    %v138 = vmul.f32 %v118, %v137
    %v139 = vadd.f32 %v138, 1.0
    %v140 = vrcp.pop %v139
    %v141 = vmul.f32 %v139, %v140
    %v142 = vsub.f32 1.0, %v141
    %v143 = vmul.f32 %v140, %v142
    %v144 = vadd.f32 %v140, %v143
    %vm145 = vweird.f32 %v139
    %vm146 = vweird.f32 %v140
    %vm147 = vmor %vm145, %vm146
    %v148 = vsel %vm147, %v140, %v144
    %v149 = vand.u32 2147483647, %v139
    %vm150 = vcmp.eq.f32.partialorder %v149, 8.507059e+37
    %v151 = vand.u32 %v139, 2147483648
    %v152 = vor.u32 1.1754944e-38, %v151
    %v153 = vsel %vm150, %v152, %v148
    %v154 = vmul.f32 %v129, %v153
    %v155 = vmin.f32 %v154, 1.0
    %v156 = vmax.f32 %v155, -1.0
    %v157 = vadd.f32 %v116, 1.0
    %v158 = vadd.f32 %v156, 1.0
    %v159 = vmul.f32 %v73, %v157
    %v160 = vmul.f32 %v74, %v158
    %vm161 = vcmask 523264
    %v162 = vsel %vm161, %v159, 0.0
    %163 = vadd.xlane.f32.xlu0 %v162
    %v164 = vpop.xlane.xlu0 %163
    %v165 = vsel %vm161, %v160, 0.0
    %166 = vadd.xlane.f32.xlu0 %v165
    %v167 = vpop.xlane.xlu0 %166
    %v168 = vrcp.pop 64.0
    %v169 = vmul.f32 64.0, %v168
    %v170 = vsub.f32 1.0, %v169
    %v171 = vmul.f32 %v168, %v170
    %v172 = vadd.f32 %v168, %v171
    %vm173 = vweird.f32 %v168
    %v174 = vsel %vm173, %v168, %v172
    %v175 = vmul.f32 %v164, %v174
    %v176 = vmul.f32 %v167, %v174
    %v177 = vsub.f32 %v159, %v175
    %v178 = vsub.f32 %v160, %v176
    %v179 = vmul.f32 %v177, %v177
    %v180 = vmul.f32 %v178, %v178
    %v181 = vsel %vm161, %v179, 0.0
    %182 = vadd.xlane.f32.xlu0 %v181
    %v183 = vpop.xlane.xlu0 %182
    %v184 = vsel %vm161, %v180, 0.0
    %185 = vadd.xlane.f32.xlu0 %v184
    %v186 = vpop.xlane.xlu0 %185
    %v187 = vmul.f32 %v183, %v174
    %v188 = vmul.f32 %v186, %v174
    %v189 = vadd.f32 %v187, 1e-12
    %v190 = vadd.f32 %v188, 1e-12
    %v191 = vrsqrt.pop %v189
    %v192 = vmul.f32 %v191, %v189
    %v193 = vmul.f32 %v192, %v191
    %v194 = vmul.f32 0.5, %v193
    %v195 = vsub.f32 1.5, %v194
    %v196 = vmul.f32 %v191, %v195
    %vm197 = vweird.f32 %v189
    %vm198 = vweird.f32 %v191
    %vm199 = vmor %vm197, %vm198
    %v200 = vsel %vm199, %v191, %v196
    %v201 = vrsqrt.pop %v190
    %v202 = vmul.f32 %v201, %v190
    %v203 = vmul.f32 %v202, %v201
    %v204 = vmul.f32 0.5, %v203
    %v205 = vsub.f32 1.5, %v204
    %v206 = vmul.f32 %v201, %v205
    %vm207 = vweird.f32 %v190
    %vm208 = vweird.f32 %v201
    %vm209 = vmor %vm207, %vm208
    %v210 = vsel %vm209, %v201, %v206
    %v211 = vmul.f32 %v177, %v200
    %v212 = vmul.f32 %v178, %v210
    %v213 = vld [vmem:[%s3] sm:$0x1]
    %v215 = vperm.slane %v213, 0
    %v217 = vmul.f32 %v211, %v215
    %v218 = vmul.f32 %v212, %v215
    %v219 = vld [vmem:[%s4] sm:$0x1]
    %v221 = vperm.slane %v219, 0
    %v223 = vadd.f32 %v217, %v221
    %v224 = vadd.f32 %v218, %v221
    %v225 = vpack.c.bf16 %v224, %v223
    %v226 = vld [vmem:[%s5] sm:$0xf]
    %v227 = vld [vmem:[%s5 + $0x4] sm:$0xf]
    %v228 = vld [vmem:[%s5 + $0x8] sm:$0xf]
    %v229 = vld [vmem:[%s5 + $0xc] sm:$0xf]
    %v230 = vld [vmem:[%s5 + $0x10] sm:$0xf]
    %v231 = vld [vmem:[%s5 + $0x14] sm:$0xf]
    %v232 = vld [vmem:[%s5 + $0x18] sm:$0xf]
    %v233 = vld [vmem:[%s5 + $0x1c] sm:$0xf]
    %v234 = vld [vmem:[%s6] sm:$0x1]
    %v236 = vperm.slane %v234, 0
    %v246 = vunpack.c.l.b16 %v226
    %v247 = vunpack.c.l.b16 %v227
    %v248 = vunpack.c.l.b16 %v228
    %v249 = vunpack.c.l.b16 %v229
    %v250 = vunpack.c.l.b16 %v230
    %v251 = vunpack.c.l.b16 %v231
    %v252 = vunpack.c.l.b16 %v232
    %v253 = vunpack.c.l.b16 %v233
    %v254 = vpack.c.b16 %v247, %v246
    %v255 = vpack.c.b16 %v249, %v248
    %v256 = vpack.c.b16 %v251, %v250
    %v257 = vpack.c.b16 %v253, %v252
    %v263 = vsel %vm161, %v225, 0
    %265 = vmatpush.bf16.msra.mxu0 0
    %266 = vmatpush.bf16.msra.mxu0 0
    %267 = vmatpush.bf16.msra.mxu0 0
    %268 = vmatpush.bf16.msra.mxu0 0
    %269 = vmatpush.bf16.msra.mxu0 %v257
    %270 = vmatpush.bf16.msra.mxu0 %v256
    %271 = vmatpush.bf16.msra.mxu0 %v255
    %272 = vmatpush.bf16.msra.mxu0 %v254
    %273 = vmatmul.bf16.gmra.mxu0 %v263
    %v274 = vpop.f32.mrf.mxu0
    %v275 = vadd.f32 %v236, %v274
    %v276 = vpop.f32.mrf.mxu0
    %v277 = vadd.f32 %v236, %v276
    %278 = vdwg.mxu0
    %279 = vst [vmem:[#allocation2] sm:$0xff] %v275
    %280 = vst [vmem:[#allocation2 + $0x8] sm:$0xff] %v277
    // Predicated region
    $region30: #{tabformer_lm_head.1} parent=1 // pred_check
      _
    $region31: #{tabformer_lm_head.1} parent=1 // pred_check_branch
      %282 = sbr.rel (0) target = $region33
    $region32: #{tabformer_lm_head.1} parent=1 // pred_region
      %284 = vsyncadd [#allocation3], 0
      %s285 = sshll.u32 [#allocation2], 4
      %s286 = int_to_ptr.vmem [resolvable:$true] %s285
      %s287 = sshll.u32 %s7, 4
      %s288 = int_to_ptr.hbm [resolvable:$true] %s287
      %293 = dma.vmem_to_hbm [thread:$0]  %s286, 256, %s288, [#allocation3], 128, 128, 8
    $region33: #{tabformer_lm_head.1} parent=1 // pred_fallthru
      _
    // Predicated region
    $region34: #{tabformer_lm_head.1} parent=1 // pred_check
      _
    $region35: #{tabformer_lm_head.1} parent=1 // pred_check_branch
      %295 = sbr.rel (0) target = $region37
    $region36: #{tabformer_lm_head.1} parent=1 // pred_region
      %297 = dma.done [#allocation3], 256
    $region37: #{tabformer_lm_head.1} parent=1 // pred_fallthru
      _
    %298 = vsyncpa [#allocation3], 1

</llo_original>
